<compile_context>
chip_gen: v5e
topology: v5e:2x2
jax: 0.10.0
libtpu: 0.0.40
codegen_flags: <defaults>
</compile_context>

<pallas_src>
import functools
import math

import jax
import jax.numpy as jnp
from jax.experimental import pallas as pl
from jax.experimental.pallas import tpu as pltpu

LEAK = 0.2
BN_EPS = 1e-5
LANE = 128
SUBLANE = 8
MAX_BLOCK_M = 512                      # M-tile; multiple of 8, sized for v7x VMEM
VMEM_LIMIT_BYTES = 48 * 1024 * 1024    # explicit scoped-VMEM limit (fits v7x 64 MiB)


# ---------------------------------------------------------------------------
# Small helpers
# ---------------------------------------------------------------------------
def _round_up(x, m):
    return -(-x // m) * m


def _pad_axis(x, axis, target):
    if x.shape[axis] == target:
        return x
    pads = [(0, 0)] * x.ndim
    pads[axis] = (0, target - x.shape[axis])
    return jnp.pad(x, pads)


def _pick_block_m(m):
    if m >= MAX_BLOCK_M:
        return MAX_BLOCK_M
    return _round_up(max(m, SUBLANE), SUBLANE)


def _im2col(x, k, stride, pad):
    """x: (N,H,W,C) -> patches (N*Hout*Wout, k*k*C), plus output spatial dims."""
    n, h, w, c = x.shape
    xp = jnp.pad(x, ((0, 0), (pad, pad), (pad, pad), (0, 0)))
    hout = (h + 2 * pad - k) // stride + 1
    wout = (w + 2 * pad - k) // stride + 1
    cols = []
    for kh in range(k):
        for kw in range(k):
            cols.append(
                xp[:, kh:kh + stride * hout:stride, kw:kw + stride * wout:stride, :]
            )
    patches = jnp.concatenate(cols, axis=-1)  # (N, Hout, Wout, k*k*C)
    return patches.reshape(n * hout * wout, k * k * c), (n, hout, wout)


def _prep_patches(x, w, stride):
    """im2col + pad contraction to 128 + pad rows to a multiple of block_m + bf16."""
    k = w.shape[0]
    cout = w.shape[-1]
    pad = (k - 1) // 2  # kw=5, padw=2
    patches, dims = _im2col(x, k, stride, pad)
    m = patches.shape[0]
    kp_pad = _round_up(patches.shape[1], LANE)        # align contraction dim
    patches = _pad_axis(patches, 1, kp_pad)
    wm = _pad_axis(w.reshape(-1, cout), 0, kp_pad)
    block_m = _pick_block_m(m)
    m_pad = _round_up(m, block_m)
    patches = _pad_axis(patches, 0, m_pad)
    return (patches.astype(jnp.bfloat16), wm.astype(jnp.bfloat16),
            m, m_pad, block_m, kp_pad, cout, dims)


# ---------------------------------------------------------------------------
# Pallas kernels
# ---------------------------------------------------------------------------
def _conv_bias_act_kernel(p_ref, w_ref, b_ref, o_ref, *, use_bias, use_act):
    """Tiled matmul + bias + LeakyReLU (no BN). bf16 in, f32 accumulate."""
    y = jnp.dot(p_ref[...], w_ref[...], preferred_element_type=jnp.float32)
    if use_bias:
        y = y + b_ref[...]
    if use_act:
        y = jnp.where(y >= 0.0, y, LEAK * y)
    o_ref[...] = y


def _conv_stats_kernel(p_ref, w_ref, y_ref, sum_ref, ssq_ref, *, block_m, m_true):
    """BN pass 1: tiled matmul; accumulate per-channel sum / sum-of-squares."""
    i = pl.program_id(0)

    @pl.when(i == 0)
    def _():
        sum_ref[...] = jnp.zeros_like(sum_ref)
        ssq_ref[...] = jnp.zeros_like(ssq_ref)

    y = jnp.dot(p_ref[...], w_ref[...], preferred_element_type=jnp.float32)
    y_ref[...] = y

    # Mask rows beyond the true M (zero-padded tail) so batch stats stay exact.
    row = i * block_m + jax.lax.broadcasted_iota(jnp.int32, (block_m, 1), 0)
    ym = jnp.where(row < m_true, y, 0.0)
    sum_ref[...] += jnp.sum(ym, axis=0, keepdims=True)
    ssq_ref[...] += jnp.sum(ym * ym, axis=0, keepdims=True)


def _bn_act_kernel(y_ref, scale_ref, shift_ref, o_ref):
    """BN pass 2: tiled normalize (pre-folded scale/shift) + LeakyReLU."""
    y = y_ref[...] * scale_ref[...] + shift_ref[...]
    o_ref[...] = jnp.where(y >= 0.0, y, LEAK * y)


def _final_conv_heads_kernel(p_ref, w5_ref, wh_ref, b_ref, o_ref):
    """Final Cout=1 conv fused with both Linear heads (lane-dense output).

    p_ref : (1, P, K5)  bf16 im2col patches of one image
    w5_ref: (K5, 128)   bf16, conv weight in column 0 (rest zero)
    wh_ref: (P, HP)     f32, [wb | wc | 0-pad] head weights
    b_ref : (1, HP)     f32, combined bias (conv bias folded through heads)
    o_ref : (1, 1, HP)
    """
    y = jnp.dot(p_ref[0], w5_ref[...], preferred_element_type=jnp.float32)  # (P, 128)
    y0 = y[:, 0:1]                                                          # conv output
    logits = jnp.sum(y0 * wh_ref[...], axis=0, keepdims=True) + b_ref[...]  # (1, HP)
    o_ref[0] = logits


# ---------------------------------------------------------------------------
# Layer wrappers (plain-JAX glue around pallas_call)
# ---------------------------------------------------------------------------
def conv_bias_act(x, w, b, stride, *, use_bias=True, use_act=True):
    patches, wm, m, m_pad, bm, kp, cout, (n, hout, wout) = _prep_patches(x, w, stride)
    grid = (m_pad // bm,)
    out = pl.pallas_call(
        functools.partial(_conv_bias_act_kernel, use_bias=use_bias, use_act=use_act),
        out_shape=jax.ShapeDtypeStruct((m_pad, cout), jnp.float32),
        grid=grid,
        in_specs=[
            pl.BlockSpec((bm, kp), lambda i: (i, 0)),      # patch tile (pipelined)
            pl.BlockSpec((kp, cout), lambda i: (0, 0)),    # weights resident
            pl.BlockSpec((1, cout), lambda i: (0, 0)),     # bias resident
        ],
        out_specs=pl.BlockSpec((bm, cout), lambda i: (i, 0)),
        compiler_params=pltpu.CompilerParams(
            dimension_semantics=("parallel",),
            vmem_limit_bytes=VMEM_LIMIT_BYTES),
    )(patches, wm, b.reshape(1, cout).astype(jnp.float32))
    return out[:m].reshape(n, hout, wout, cout)


def conv_bn_act(x, w, stride):
    patches, wm, m, m_pad, bm, kp, cout, (n, hout, wout) = _prep_patches(x, w, stride)
    grid = (m_pad // bm,)

    # ---- pass 1: tiled matmul + global per-channel sum / sumsq -------------
    y, csum, cssq = pl.pallas_call(
        functools.partial(_conv_stats_kernel, block_m=bm, m_true=m),
        out_shape=(
            jax.ShapeDtypeStruct((m_pad, cout), jnp.float32),
            jax.ShapeDtypeStruct((1, cout), jnp.float32),
            jax.ShapeDtypeStruct((1, cout), jnp.float32),
        ),
        grid=grid,
        in_specs=[
            pl.BlockSpec((bm, kp), lambda i: (i, 0)),
            pl.BlockSpec((kp, cout), lambda i: (0, 0)),
        ],
        out_specs=(
            pl.BlockSpec((bm, cout), lambda i: (i, 0)),
            pl.BlockSpec((1, cout), lambda i: (0, 0)),     # accumulator (resident)
            pl.BlockSpec((1, cout), lambda i: (0, 0)),     # accumulator (resident)
        ),
        compiler_params=pltpu.CompilerParams(
            dimension_semantics=("arbitrary",),            # reduction into stats
            vmem_limit_bytes=VMEM_LIMIT_BYTES),
    )(patches, wm)

    # Finalize BN stats (tiny, plain JAX).  Biased variance == PyTorch
    # train-mode normalization; gamma=1, beta=0.
    mean = csum / float(m)
    var = jnp.maximum(cssq / float(m) - mean * mean, 0.0)
    inv_std = jax.lax.rsqrt(var + BN_EPS)
    scale = inv_std
    shift = -mean * inv_std

    # ---- pass 2: tiled normalize + LeakyReLU --------------------------------
    out = pl.pallas_call(
        _bn_act_kernel,
        out_shape=jax.ShapeDtypeStruct((m_pad, cout), jnp.float32),
        grid=grid,
        in_specs=[
            pl.BlockSpec((bm, cout), lambda i: (i, 0)),
            pl.BlockSpec((1, cout), lambda i: (0, 0)),
            pl.BlockSpec((1, cout), lambda i: (0, 0)),
        ],
        out_specs=pl.BlockSpec((bm, cout), lambda i: (i, 0)),
        compiler_params=pltpu.CompilerParams(
            dimension_semantics=("parallel",),
            vmem_limit_bytes=VMEM_LIMIT_BYTES),
    )(y, scale, shift)
    return out[:m].reshape(n, hout, wout, cout)


def final_conv_heads(x, w5, b5, wb, bb, wc, bc):
    """Fused: final 5x5 Cout=1 conv + flatten + binary/category Linear heads."""
    k = w5.shape[0]
    pad = (k - 1) // 2
    patches, (n, hout, wout) = _im2col(x, k, 1, pad)   # (N*P, 25*Cin)
    p = hout * wout
    kp = _round_up(patches.shape[1], LANE)
    patches = _pad_axis(patches, 1, kp).reshape(n, p, kp)

    w5m = _pad_axis(_pad_axis(w5.reshape(-1, 1), 0, kp), 1, LANE)   # (kp, 128)

    e = wc.shape[1]
    hp = _round_up(1 + e, LANE)                        # lane-dense output width
    w_heads = jnp.zeros((p, hp), jnp.float32)
    w_heads = w_heads.at[:, 0:1].set(wb)
    w_heads = w_heads.at[:, 1:1 + e].set(wc)
    bias = jnp.zeros((1, hp), jnp.float32)
    bias = bias.at[0, 0].set(bb[0])
    bias = bias.at[0, 1:1 + e].set(bc)
    # fold the final conv's scalar bias through the heads
    bias = bias + b5[0] * jnp.sum(w_heads, axis=0, keepdims=True)

    out = pl.pallas_call(
        _final_conv_heads_kernel,
        out_shape=jax.ShapeDtypeStruct((n, 1, hp), jnp.float32),
        grid=(n,),
        in_specs=[
            pl.BlockSpec((1, p, kp), lambda i: (i, 0, 0)),   # per-image patch slab
            pl.BlockSpec((kp, LANE), lambda i: (0, 0)),      # conv weight resident
            pl.BlockSpec((p, hp), lambda i: (0, 0)),         # head weights resident
            pl.BlockSpec((1, hp), lambda i: (0, 0)),         # combined bias resident
        ],
        out_specs=pl.BlockSpec((1, 1, hp), lambda i: (i, 0, 0)),
        compiler_params=pltpu.CompilerParams(
            dimension_semantics=("parallel",),
            vmem_limit_bytes=VMEM_LIMIT_BYTES),
    )(patches.astype(jnp.bfloat16), w5m.astype(jnp.bfloat16), w_heads, bias)

    out = out.reshape(n, hp)
    return out[:, 0:1], out[:, 1:1 + e]


# ---------------------------------------------------------------------------
# Parameters & forward
# ---------------------------------------------------------------------------
def init_params(key, input_nc, embedding_num, ndf, image_size):
    """Deterministic synthetic parameters with the exact module shapes."""
    kw = 5
    specs = [
        # (Cin, Cout, stride, has_bias, has_bn, has_act)
        (input_nc, ndf, 2, True, False, True),
        (ndf, ndf * 2, 2, False, True, True),
        (ndf * 2, ndf * 4, 2, False, True, True),
        (ndf * 4, ndf * 8, 1, False, True, True),
        (ndf * 8, 1, 1, True, False, False),
    ]
    params = {"convs": []}
    for (cin, cout, stride, has_bias, has_bn, has_act) in specs:
        assert not (has_bias and has_bn), "bias + BatchNorm would double-apply an offset"
        key, k1, k2 = jax.random.split(key, 3)
        w = jax.random.normal(k1, (kw, kw, cin, cout), jnp.float32) * 0.02
        b = (jax.random.normal(k2, (cout,), jnp.float32) * 0.02
             if has_bias else jnp.zeros((cout,), jnp.float32))
        params["convs"].append(
            dict(w=w, b=b, stride=stride, use_bias=has_bias, use_bn=has_bn, use_act=has_act)
        )

    s = image_size
    for _ in range(3):
        s = math.ceil(s / 2)
    final_features = 1 * s * s

    key, k1, k2, k3, k4 = jax.random.split(key, 5)
    params["wb"] = jax.random.normal(k1, (final_features, 1), jnp.float32) * 0.05
    params["bb"] = jax.random.normal(k2, (1,), jnp.float32) * 0.05
    params["wc"] = jax.random.normal(k3, (final_features, embedding_num), jnp.float32) * 0.05
    params["bc"] = jax.random.normal(k4, (embedding_num,), jnp.float32) * 0.05
    return params


def discriminator_forward(params, x_nchw):
    """x_nchw: (B, input_nc, H, W) — PyTorch layout. Returns (binary, category)."""
    x = jnp.transpose(x_nchw, (0, 2, 3, 1)).astype(jnp.float32)  # -> NHWC
    convs = params["convs"]
    c0 = convs[0]
    x = conv_bias_act(x, c0["w"], c0["b"], c0["stride"])
    for c in convs[1:4]:
        x = conv_bn_act(x, c["w"], c["stride"])
    c4 = convs[4]
    # final conv has 1 channel, so NHWC flatten == PyTorch NCHW .view(B, -1)
    return final_conv_heads(x, c4["w"], c4["b"],
                            params["wb"], params["bb"], params["wc"], params["bc"])


def reference_forward(params, x_nchw):
    """Pure-JAX (f32) reference of the same module for a tolerance check."""
    x = jnp.transpose(x_nchw, (0, 2, 3, 1)).astype(jnp.float32)
    for c in params["convs"]:
        y = jax.lax.conv_general_dilated(
            x, c["w"], window_strides=(c["stride"], c["stride"]),
            padding=[(2, 2), (2, 2)],
            dimension_numbers=("NHWC", "HWIO", "NHWC"))
        if c["use_bias"]:
            y = y + c["b"]
        if c["use_bn"]:
            mean = jnp.mean(y, axis=(0, 1, 2), keepdims=True)
            var = jnp.mean((y - mean) ** 2, axis=(0, 1, 2), keepdims=True)
            y = (y - mean) * jax.lax.rsqrt(var + BN_EPS)
        if c["use_act"]:
            y = jnp.where(y >= 0.0, y, LEAK * y)
        x = y
    feats = x.reshape(x.shape[0], -1)
    bl = feats @ params["wb"] + params["bb"]
    cl = feats @ params["wc"] + params["bc"]
    return bl, cl


if __name__ == "__main__":
    # Small, module-consistent shapes.
    batch = 2
    input_nc = 4
    embedding_num = 8
    ndf = 16
    image_size = 16

    key = jax.random.PRNGKey(0)
    key, kx = jax.random.split(key)
    x = jax.random.normal(kx, (batch, input_nc, image_size, image_size), jnp.float32)

    params = init_params(key, input_nc, embedding_num, ndf, image_size)

    binary_logits, category_logits = discriminator_forward(params, x)
    jax.block_until_ready((binary_logits, category_logits))

    assert binary_logits.shape == (batch, 1)
    assert category_logits.shape == (batch, embedding_num)
    assert bool(jnp.all(jnp.isfinite(binary_logits)))
    assert bool(jnp.all(jnp.isfinite(category_logits)))

    ref_b, ref_c = reference_forward(params, x)
    assert bool(jnp.allclose(binary_logits, ref_b, rtol=5e-2, atol=5e-2))
    assert bool(jnp.allclose(category_logits, ref_c, rtol=5e-2, atol=5e-2))

    print("KERNEL_OK")
</pallas_src>

<mosaic_0001>
module attributes {stable_mosaic.version = 11 : i64} {
  func.func @_conv_bias_act_kernel(%arg0: i32, %arg1: memref<128x128xbf16, #tpu.memory_space<vmem>>, %arg2: memref<128x16xbf16, #tpu.memory_space<vmem>>, %arg3: memref<1x16xf32, #tpu.memory_space<vmem>>, %arg4: memref<128x16xf32, #tpu.memory_space<vmem>>) attributes {dimension_semantics = [#tpu.dimension_semantics<parallel>], iteration_bounds = array<i64: 1>, scalar_prefetch = 0 : i64, scratch_operands = 0 : i64, tpu.core_type = #tpu.core_type<tc>, window_params = [{transform_indices = @transform_0, window_bounds = array<i64: 128, 128>}, {pipeline_mode = #tpu.pipeline_mode<synchronous>, transform_indices = @transform_1, window_bounds = array<i64: 128, 16>}, {pipeline_mode = #tpu.pipeline_mode<synchronous>, transform_indices = @transform_2, window_bounds = array<i64: 1, 16>}, {transform_indices = @transform_3, window_bounds = array<i64: 128, 16>}]} {
    %c0 = arith.constant 0 : index
    %c0_0 = arith.constant 0 : index
    %0 = vector.load %arg1[%c0, %c0_0] : memref<128x128xbf16, #tpu.memory_space<vmem>>, vector<128x128xbf16>
    %c0_1 = arith.constant 0 : index
    %c0_2 = arith.constant 0 : index
    %1 = vector.load %arg2[%c0_1, %c0_2] : memref<128x16xbf16, #tpu.memory_space<vmem>>, vector<128x16xbf16>
    %cst = arith.constant dense<0.000000e+00> : vector<128x16xf32>
    %2 = tpu.matmul %0, %1, %cst {dimension_numbers = #tpu.dot_dimension_numbers<[1], [0], [0], [1], [0, 0, 1, 1], [], []>} : vector<128x128xbf16>, vector<128x16xbf16>, vector<128x16xf32> -> vector<128x16xf32>
    %c0_3 = arith.constant 0 : index
    %c0_4 = arith.constant 0 : index
    %3 = vector.load %arg3[%c0_3, %c0_4] : memref<1x16xf32, #tpu.memory_space<vmem>>, vector<1x16xf32>
    %4 = vector.broadcast %3 : vector<1x16xf32> to vector<128x16xf32>
    %5 = arith.addf %2, %4 : vector<128x16xf32>
    %cst_5 = arith.constant 0.000000e+00 : f32
    %6 = vector.broadcast %cst_5 : f32 to vector<128x16xf32>
    %7 = arith.cmpf oge, %5, %6 : vector<128x16xf32>
    %cst_6 = arith.constant 2.000000e-01 : f32
    %8 = vector.broadcast %cst_6 : f32 to vector<128x16xf32>
    %9 = arith.mulf %8, %5 : vector<128x16xf32>
    %10 = arith.select %7, %5, %9 : vector<128x16xi1>, vector<128x16xf32>
    %c0_7 = arith.constant 0 : index
    %c0_8 = arith.constant 0 : index
    %11 = vector.load %arg4[%c0_7, %c0_8] : memref<128x16xf32, #tpu.memory_space<vmem>>, vector<128x16xf32>
    tpu.vector_store %arg4[%c0_7, %c0_8], %10 {strides = array<i32>} : memref<128x16xf32, #tpu.memory_space<vmem>>, vector<128x16xf32>,
    return
  }
  func.func @transform_0(%arg0: i32) -> (i32, i32) {
    %c0_i32 = arith.constant 0 : i32
    %c0_i32_0 = arith.constant 0 : i32
    return %arg0, %c0_i32 : i32, i32
  }
  func.func @transform_1(%arg0: i32) -> (i32, i32) {
    %c0_i32 = arith.constant 0 : i32
    %c0_i32_0 = arith.constant 0 : i32
    %c0_i32_1 = arith.constant 0 : i32
    return %c0_i32, %c0_i32_0 : i32, i32
  }
  func.func @transform_2(%arg0: i32) -> (i32, i32) {
    %c0_i32 = arith.constant 0 : i32
    %c0_i32_0 = arith.constant 0 : i32
    %c0_i32_1 = arith.constant 0 : i32
    return %c0_i32, %c0_i32_0 : i32, i32
  }
  func.func @transform_3(%arg0: i32) -> (i32, i32) {
    %c0_i32 = arith.constant 0 : i32
    %c0_i32_0 = arith.constant 0 : i32
    return %arg0, %c0_i32 : i32, i32
  }
}

</mosaic_0001>

<llo_original>
// kernel: tpu_custom_call.1
$region0: #{tpu_custom_call.1}
  #allocation0 [shape = 'u32[]', space=smem, size = 0x4, offset = 0x4, fixed_abs, tag = 'smem constant byte address 0x4 - core index']
  #allocation1 [shape = 'u32[72,128]{1,0:T(1,128)}', space=vmem, size = 0x9000, scoped, tag = 'internal scratch']
  %s0 = inlined_call_operand.vmem [shape: bf16[128,128], index: 0, kind: input, shape index: {}]
  %s1 = inlined_call_operand.vmem [shape: bf16[128,16], index: 1, kind: input, shape index: {}]
  %s2 = inlined_call_operand.vmem [shape: f32[1,16], index: 2, kind: input, shape index: {}]
  %s3 = inlined_call_operand.vmem [shape: f32[128,16], index: 3, kind: output, shape index: {}]
  %s4 = sld [smem:[#allocation0]]
  $region22: #{tpu_custom_call.1} parent=0
    _
  %s6 = ssub.s32 1, %s4
  %s7 = scalar_select 0, %s6, %s4
  // Predicated region
  $region2: #{tpu_custom_call.1} parent=0 // pred_check
    _
  $region3: #{tpu_custom_call.1} parent=0 // pred_check_branch
    %9 = sbr.rel (0) target = $region5
  $region4: #{tpu_custom_call.1} parent=0 // pred_region
    _
  $region5: #{tpu_custom_call.1} parent=0 // pred_fallthru
    _
  // Predicated region
  $region6: #{tpu_custom_call.1} parent=0 // pred_check
    _
  $region7: #{tpu_custom_call.1} parent=0 // pred_check_branch
    %11 = sbr.rel (0) target = $region9
  $region8: #{tpu_custom_call.1} parent=0 // pred_region
    _
  $region9: #{tpu_custom_call.1} parent=0 // pred_fallthru
    _
  // Predicated region
  $region10: #{tpu_custom_call.1} parent=0 // pred_check
    _
  $region11: #{tpu_custom_call.1} parent=0 // pred_check_branch
    %13 = sbr.rel (0) target = $region13
  $region12: #{tpu_custom_call.1} parent=0 // pred_region
    _
  $region13: #{tpu_custom_call.1} parent=0 // pred_fallthru
    _
  %v14 = vld [vmem:[%s0] sm:$0xf]
  %v15 = vld [vmem:[%s0 + $0x4] sm:$0xf]
  %v16 = vld [vmem:[%s0 + $0x8] sm:$0xf]
  %v17 = vld [vmem:[%s0 + $0xc] sm:$0xf]
  %v18 = vld [vmem:[%s0 + $0x10] sm:$0xf]
  %v19 = vld [vmem:[%s0 + $0x14] sm:$0xf]
  %v20 = vld [vmem:[%s0 + $0x18] sm:$0xf]
  %v21 = vld [vmem:[%s0 + $0x1c] sm:$0xf]
  %v22 = vld [vmem:[%s0 + $0x20] sm:$0xf]
  %v23 = vld [vmem:[%s0 + $0x24] sm:$0xf]
  %v24 = vld [vmem:[%s0 + $0x28] sm:$0xf]
  %v25 = vld [vmem:[%s0 + $0x2c] sm:$0xf]
  %v26 = vld [vmem:[%s0 + $0x30] sm:$0xf]
  %v27 = vld [vmem:[%s0 + $0x34] sm:$0xf]
  %v28 = vld [vmem:[%s0 + $0x38] sm:$0xf]
  %v29 = vld [vmem:[%s0 + $0x3c] sm:$0xf]
  %v30 = vld [vmem:[%s1] sm:$0xf]
  %v31 = vld [vmem:[%s1 + $0x4] sm:$0xf]
  %v32 = vld [vmem:[%s1 + $0x8] sm:$0xf]
  %v33 = vld [vmem:[%s1 + $0xc] sm:$0xf]
  %v34 = vld [vmem:[%s1 + $0x10] sm:$0xf]
  %v35 = vld [vmem:[%s1 + $0x14] sm:$0xf]
  %v36 = vld [vmem:[%s1 + $0x18] sm:$0xf]
  %v37 = vld [vmem:[%s1 + $0x1c] sm:$0xf]
  %v38 = vld [vmem:[%s1 + $0x20] sm:$0xf]
  %v39 = vld [vmem:[%s1 + $0x24] sm:$0xf]
  %v40 = vld [vmem:[%s1 + $0x28] sm:$0xf]
  %v41 = vld [vmem:[%s1 + $0x2c] sm:$0xf]
  %v42 = vld [vmem:[%s1 + $0x30] sm:$0xf]
  %v43 = vld [vmem:[%s1 + $0x34] sm:$0xf]
  %v44 = vld [vmem:[%s1 + $0x38] sm:$0xf]
  %v45 = vld [vmem:[%s1 + $0x3c] sm:$0xf]
  %v46 = vld [vmem:[%s2] sm:$0x1]
  %v48 = vperm.slane %v46, 0
  %v66 = vunpack.c.l.b16 %v14
  %v67 = vunpack.c.l.b16 %v15
  %v68 = vunpack.c.l.b16 %v16
  %v69 = vunpack.c.l.b16 %v17
  %v70 = vunpack.c.l.b16 %v18
  %v71 = vunpack.c.l.b16 %v19
  %v72 = vunpack.c.l.b16 %v20
  %v73 = vunpack.c.l.b16 %v21
  %v74 = vunpack.c.l.b16 %v22
  %v75 = vunpack.c.l.b16 %v23
  %v76 = vunpack.c.l.b16 %v24
  %v77 = vunpack.c.l.b16 %v25
  %v78 = vunpack.c.l.b16 %v26
  %v79 = vunpack.c.l.b16 %v27
  %v80 = vunpack.c.l.b16 %v28
  %v81 = vunpack.c.l.b16 %v29
  %v82 = vpack.c.b16 %v67, %v66
  %v83 = vpack.c.b16 %v69, %v68
  %v84 = vpack.c.b16 %v71, %v70
  %v85 = vpack.c.b16 %v73, %v72
  %v86 = vpack.c.b16 %v75, %v74
  %v87 = vpack.c.b16 %v77, %v76
  %v88 = vpack.c.b16 %v79, %v78
  %v89 = vpack.c.b16 %v81, %v80
  %v114 = vunpack.c.l.b16 %v30
  %v115 = vunpack.c.l.b16 %v31
  %v116 = vunpack.c.l.b16 %v32
  %v117 = vunpack.c.l.b16 %v33
  %v118 = vunpack.c.l.b16 %v34
  %v119 = vunpack.c.l.b16 %v35
  %v120 = vunpack.c.l.b16 %v36
  %v121 = vunpack.c.l.b16 %v37
  %v122 = vunpack.c.l.b16 %v38
  %v123 = vunpack.c.l.b16 %v39
  %v124 = vunpack.c.l.b16 %v40
  %v125 = vunpack.c.l.b16 %v41
  %v126 = vunpack.c.l.b16 %v42
  %v127 = vunpack.c.l.b16 %v43
  %v128 = vunpack.c.l.b16 %v44
  %v129 = vunpack.c.l.b16 %v45
  %v130 = vpack.c.b16 %v115, %v114
  %v131 = vpack.c.b16 %v117, %v116
  %v132 = vpack.c.b16 %v119, %v118
  %v133 = vpack.c.b16 %v121, %v120
  %v134 = vpack.c.b16 %v123, %v122
  %v135 = vpack.c.b16 %v125, %v124
  %v136 = vpack.c.b16 %v127, %v126
  %v137 = vpack.c.b16 %v129, %v128
  %146 = vmatpush.bf16.msra.mxu0 %v137
  %147 = vmatpush.bf16.msra.mxu0 %v136
  %148 = vmatpush.bf16.msra.mxu0 %v135
  %149 = vmatpush.bf16.msra.mxu0 %v134
  %150 = vmatpush.bf16.msra.mxu0 %v133
  %151 = vmatpush.bf16.msra.mxu0 %v132
  %152 = vmatpush.bf16.msra.mxu0 %v131
  %153 = vmatpush.bf16.msra.mxu0 %v130
  %154 = vmatmul.bf16.gmra.mxu0 %v82
  %v155 = vpop.f32.mrf.mxu0
  %v156 = vadd.f32 %v48, %v155
  %v157 = vpop.f32.mrf.mxu0
  %v158 = vadd.f32 %v48, %v157
  %159 = vmatmul.bf16.gmra.mxu0 %v83
  %v160 = vpop.f32.mrf.mxu0
  %v161 = vadd.f32 %v48, %v160
  %v162 = vpop.f32.mrf.mxu0
  %v163 = vadd.f32 %v48, %v162
  %164 = vmatmul.bf16.gmra.mxu0 %v84
  %v165 = vpop.f32.mrf.mxu0
  %v166 = vadd.f32 %v48, %v165
  %v167 = vpop.f32.mrf.mxu0
  %v168 = vadd.f32 %v48, %v167
  %169 = vmatmul.bf16.gmra.mxu0 %v85
  %v170 = vpop.f32.mrf.mxu0
  %v171 = vadd.f32 %v48, %v170
  %v172 = vpop.f32.mrf.mxu0
  %v173 = vadd.f32 %v48, %v172
  %174 = vmatmul.bf16.gmra.mxu0 %v86
  %v175 = vpop.f32.mrf.mxu0
  %v176 = vadd.f32 %v48, %v175
  %v177 = vpop.f32.mrf.mxu0
  %v178 = vadd.f32 %v48, %v177
  %179 = vmatmul.bf16.gmra.mxu0 %v87
  %v180 = vpop.f32.mrf.mxu0
  %v181 = vadd.f32 %v48, %v180
  %v182 = vpop.f32.mrf.mxu0
  %v183 = vadd.f32 %v48, %v182
  %184 = vmatmul.bf16.gmra.mxu0 %v88
  %v185 = vpop.f32.mrf.mxu0
  %v186 = vadd.f32 %v48, %v185
  %v187 = vpop.f32.mrf.mxu0
  %v188 = vadd.f32 %v48, %v187
  %189 = vmatmul.bf16.gmra.mxu0 %v89
  %v190 = vpop.f32.mrf.mxu0
  %v191 = vadd.f32 %v48, %v190
  %v192 = vpop.f32.mrf.mxu0
  %v193 = vadd.f32 %v48, %v192
  %194 = vdwg.mxu0
  %vm195 = vcmp.ge.f32.partialorder %v156, 0.0
  %vm196 = vcmp.ge.f32.partialorder %v158, 0.0
  %vm197 = vcmp.ge.f32.partialorder %v161, 0.0
  %vm198 = vcmp.ge.f32.partialorder %v163, 0.0
  %vm199 = vcmp.ge.f32.partialorder %v166, 0.0
  %vm200 = vcmp.ge.f32.partialorder %v168, 0.0
  %vm201 = vcmp.ge.f32.partialorder %v171, 0.0
  %vm202 = vcmp.ge.f32.partialorder %v173, 0.0
  %vm203 = vcmp.ge.f32.partialorder %v176, 0.0
  %vm204 = vcmp.ge.f32.partialorder %v178, 0.0
  %vm205 = vcmp.ge.f32.partialorder %v181, 0.0
  %vm206 = vcmp.ge.f32.partialorder %v183, 0.0
  %vm207 = vcmp.ge.f32.partialorder %v186, 0.0
  %vm208 = vcmp.ge.f32.partialorder %v188, 0.0
  %vm209 = vcmp.ge.f32.partialorder %v191, 0.0
  %vm210 = vcmp.ge.f32.partialorder %v193, 0.0
  %v211 = vmul.f32 %v156, 0.2
  %v212 = vmul.f32 %v158, 0.2
  %v213 = vmul.f32 %v161, 0.2
  %v214 = vmul.f32 %v163, 0.2
  %v215 = vmul.f32 %v166, 0.2
  %v216 = vmul.f32 %v168, 0.2
  %v217 = vmul.f32 %v171, 0.2
  %v218 = vmul.f32 %v173, 0.2
  %v219 = vmul.f32 %v176, 0.2
  %v220 = vmul.f32 %v178, 0.2
  %v221 = vmul.f32 %v181, 0.2
  %v222 = vmul.f32 %v183, 0.2
  %v223 = vmul.f32 %v186, 0.2
  %v224 = vmul.f32 %v188, 0.2
  %v225 = vmul.f32 %v191, 0.2
  %v226 = vmul.f32 %v193, 0.2
  %v227 = vsel %vm195, %v156, %v211
  %v228 = vsel %vm196, %v158, %v212
  %v229 = vsel %vm197, %v161, %v213
  %v230 = vsel %vm198, %v163, %v214
  %v231 = vsel %vm199, %v166, %v215
  %v232 = vsel %vm200, %v168, %v216
  %v233 = vsel %vm201, %v171, %v217
  %v234 = vsel %vm202, %v173, %v218
  %v235 = vsel %vm203, %v176, %v219
  %v236 = vsel %vm204, %v178, %v220
  %v237 = vsel %vm205, %v181, %v221
  %v238 = vsel %vm206, %v183, %v222
  %v239 = vsel %vm207, %v186, %v223
  %v240 = vsel %vm208, %v188, %v224
  %v241 = vsel %vm209, %v191, %v225
  %v242 = vsel %vm210, %v193, %v226
  %vm243 = vcmask 130048
  %244 = vst.msk [vmem:[%s3] sm:$0xff] %vm243, %v227
  %245 = vst.msk [vmem:[%s3 + $0x8] sm:$0xff] %vm243, %v228
  %246 = vst.msk [vmem:[%s3 + $0x10] sm:$0xff] %vm243, %v229
  %247 = vst.msk [vmem:[%s3 + $0x18] sm:$0xff] %vm243, %v230
  %248 = vst.msk [vmem:[%s3 + $0x20] sm:$0xff] %vm243, %v231
  %249 = vst.msk [vmem:[%s3 + $0x28] sm:$0xff] %vm243, %v232
  %250 = vst.msk [vmem:[%s3 + $0x30] sm:$0xff] %vm243, %v233
  %251 = vst.msk [vmem:[%s3 + $0x38] sm:$0xff] %vm243, %v234
  %252 = vst.msk [vmem:[%s3 + $0x40] sm:$0xff] %vm243, %v235
  %253 = vst.msk [vmem:[%s3 + $0x48] sm:$0xff] %vm243, %v236
  %254 = vst.msk [vmem:[%s3 + $0x50] sm:$0xff] %vm243, %v237
  %255 = vst.msk [vmem:[%s3 + $0x58] sm:$0xff] %vm243, %v238
  %256 = vst.msk [vmem:[%s3 + $0x60] sm:$0xff] %vm243, %v239
  %257 = vst.msk [vmem:[%s3 + $0x68] sm:$0xff] %vm243, %v240
  %258 = vst.msk [vmem:[%s3 + $0x70] sm:$0xff] %vm243, %v241
  %259 = vst.msk [vmem:[%s3 + $0x78] sm:$0xff] %vm243, %v242
  // Predicated region
  $region14: #{tpu_custom_call.1} parent=0 // pred_check
    _
  $region15: #{tpu_custom_call.1} parent=0 // pred_check_branch
    %261 = sbr.rel (0) target = $region17
  $region16: #{tpu_custom_call.1} parent=0 // pred_region
    _
  $region17: #{tpu_custom_call.1} parent=0 // pred_fallthru
    _
  // Predicated region
  $region18: #{tpu_custom_call.1} parent=0 // pred_check
    _
  $region19: #{tpu_custom_call.1} parent=0 // pred_check_branch
    %263 = sbr.rel (0) target = $region21
  $region20: #{tpu_custom_call.1} parent=0 // pred_region
    _
  $region21: #{tpu_custom_call.1} parent=0 // pred_fallthru
    _

</llo_original>
